<compile_context>
chip_gen: v5e
topology: v5e:2x2
jax: 0.10.0
libtpu: 0.0.40
codegen_flags: <defaults>
</compile_context>

<pallas_src>
import jax
import jax.numpy as jnp
from jax.experimental import pallas as pl
from jax.experimental.pallas import tpu as pltpu

NEG_SLOPE = 0.01      # nn.LeakyReLU default

# Packed-weight row layout (lane width 128, all section starts multiples of 8).
ROW_B = 0             # rows 0:8    biases (row 0 conv1, 1 conv2, 2 conv3, 3 fc1, 4 fc2)
ROW_W1 = 8            # rows 8:12   conv1  (K=4 rows,  Cout=4  lanes)
ROW_W2 = 16           # rows 16:20  conv2  (Cin=4 rows, Cout=8  lanes)
ROW_W3 = 24           # rows 24:32  conv3  (Cin=8 rows, Cout=16 lanes)
ROW_WFC2 = 32         # rows 32:160 fc2    (72 real rows, 3 real lanes, zero padded)
ROW_WFC1 = 160        # rows 160:544 fc1   16 slabs of (24,128), data [:18,:72]
P_PAD = 24            # padded spatial positions (18 real)
N_ROWS = ROW_WFC1 + 16 * P_PAD   # 544


def _leaky(x):
    return jnp.where(x >= 0, x, NEG_SLOPE * x)


def cnn_kernel(patches_ref, w_ref, out_ref):
    x = patches_ref[...]                                   # (24,128), data [:18,:4]

    def affine_vpu(hin, wrow, k_in, brow):
        # hin (24,128) contracted over its first k_in lanes against weight rows
        # wrow:wrow+k_in (full 128-lane rows; unused lanes are zero), plus bias.
        acc = hin[:, 0:1] * w_ref[wrow:wrow + 1, :]
        for k in range(1, k_in):
            acc = acc + hin[:, k:k + 1] * w_ref[wrow + k:wrow + k + 1, :]
        return acc + w_ref[brow:brow + 1, :]

    h = _leaky(affine_vpu(x, ROW_W1, 4, 0))                # (24,128), lanes 4:  zero
    h = _leaky(affine_vpu(h, ROW_W2, 4, 1))                # (24,128), lanes 8:  zero
    h = _leaky(affine_vpu(h, ROW_W3, 8, 2))                # (24,128), lanes 16: zero

    # fc1: part[p, o] = sum_c h[p, c] * Wfc1[c, p, o]; slab rows 18:24 are zero,
    # so padded-row garbage in h contributes nothing.  One sublane reduce at end.
    part = h[:, 0:1] * w_ref[ROW_WFC1:ROW_WFC1 + P_PAD, :]
    for c in range(1, 16):
        r = ROW_WFC1 + P_PAD * c
        part = part + h[:, c:c + 1] * w_ref[r:r + P_PAD, :]
    acc = w_ref[3:4, :] + jnp.sum(part, axis=0, keepdims=True)   # (1,128), lanes 72: zero
    acc = _leaky(acc)

    # fc2: single MXU pass, lane-dense logits.  Padded lanes get -inf bias so the
    # unmasked 128-lane log_softmax is exact for the 3 real classes.
    wfc2 = w_ref[ROW_WFC2:ROW_WFC2 + 128, :]               # (128,128)
    logits = jnp.dot(acc, wfc2,
                     preferred_element_type=jnp.float32,
                     precision=jax.lax.Precision.HIGHEST) + w_ref[4:5, :]
    m = jnp.max(logits, axis=1, keepdims=True)
    s = logits - m
    lse = jnp.log(jnp.sum(jnp.exp(s), axis=1, keepdims=True))
    out_ref[...] = (s - lse).astype(jnp.float32)


def prepack_params(params):
    """One-time packing of all weights/biases into a single (544,128) block."""
    (c1w, c1b, c2w, c2b, c3w, c3b, f1w, f1b, f2w, f2b) = (
        jnp.asarray(p, jnp.float32) for p in params)
    W = jnp.zeros((N_ROWS, 128), jnp.float32)
    # Biases (one per row, lane-0 aligned).
    W = W.at[0, 0:4].set(c1b)
    W = W.at[1, 0:8].set(c2b)
    W = W.at[2, 0:16].set(c3b)
    W = W.at[3, 0:72].set(f1b)
    W = W.at[4, :].set(-jnp.inf)          # padded softmax lanes
    W = W.at[4, 0:3].set(f2b)
    # Conv weights as (K/Cin, Cout).
    W = W.at[ROW_W1:ROW_W1 + 4, 0:4].set(c1w.reshape(4, 4).T)
    W = W.at[ROW_W2:ROW_W2 + 4, 0:8].set(c2w.reshape(8, 4).T)
    W = W.at[ROW_W3:ROW_W3 + 8, 0:16].set(c3w.reshape(16, 8).T)
    # fc2 weight (72,3) -> rows 32:104, rest of the 128-row section stays zero.
    W = W.at[ROW_WFC2:ROW_WFC2 + 72, 0:3].set(f2w.T)
    # fc1 weight: flatten index = c*18 + p (PyTorch channel-major view), stored as
    # 16 lane/sublane-padded (24,128) slabs with data in [:18, :72].
    wfc1 = f1w.reshape(72, 16, 18).transpose(1, 2, 0)      # (16, 18, 72)
    slabs = jnp.zeros((16, P_PAD, 128), jnp.float32).at[:, :18, :72].set(wfc1)
    W = W.at[ROW_WFC1:, :].set(slabs.reshape(16 * P_PAD, 128))
    return W


def im2col_2x2_padded(x):
    # x: (1, 1, H, W) NCHW -> lane/sublane padded patches (24, 128),
    # data at [:Ho*Wo, :4] with col index = kh*2 + kw.
    H, W = x.shape[2], x.shape[3]
    Ho, Wo = H - 1, W - 1
    assert 16 * Ho * Wo == 288, "fc1 expects 288 = 16*Ho*Wo features"
    patches = jnp.stack(
        [x[0, 0, kh:kh + Ho, kw:kw + Wo] for kh in range(2) for kw in range(2)],
        axis=-1).reshape(Ho * Wo, 4).astype(jnp.float32)
    return jnp.zeros((P_PAD, 128), jnp.float32).at[:Ho * Wo, :4].set(patches)


@jax.jit
def cnn_forward(x, packed_w):
    patches = im2col_2x2_padded(x)
    vmem = pl.BlockSpec(memory_space=pltpu.MemorySpace.VMEM)
    out = pl.pallas_call(
        cnn_kernel,
        out_shape=jax.ShapeDtypeStruct((1, 128), jnp.float32),
        in_specs=[vmem, vmem],
        out_specs=vmem,
    )(patches, packed_w)
    return out[:, :3]


def ref_forward(x, params):
    # Pure-JAX reference, mirroring the PyTorch module exactly.
    (c1w, c1b, c2w, c2b, c3w, c3b, f1w, f1b, f2w, f2b) = params
    dn = ('NCHW', 'OIHW', 'NCHW')
    hp = jax.lax.Precision.HIGHEST
    h = jax.lax.conv_general_dilated(x, c1w, (1, 1), 'VALID',
                                     dimension_numbers=dn, precision=hp)
    h = _leaky(h + c1b.reshape(1, -1, 1, 1))
    h = jax.lax.conv_general_dilated(h, c2w, (1, 1), 'VALID',
                                     dimension_numbers=dn, precision=hp)
    h = _leaky(h + c2b.reshape(1, -1, 1, 1))
    h = jax.lax.conv_general_dilated(h, c3w, (1, 1), 'VALID',
                                     dimension_numbers=dn, precision=hp)
    h = _leaky(h + c3b.reshape(1, -1, 1, 1))
    h = h.reshape(1, -1)                                   # (1, 288), channel-major
    h = _leaky(jnp.dot(h, f1w.T, precision=hp) + f1b)
    logits = jnp.dot(h, f2w.T, precision=hp) + f2b
    return jax.nn.log_softmax(logits, axis=1).astype(jnp.float32)


def make_params(key):
    ks = jax.random.split(key, 10)
    f32 = jnp.float32
    c1w = jax.random.normal(ks[0], (4, 1, 2, 2), f32) * 0.5
    c1b = jax.random.normal(ks[1], (4,), f32) * 0.1
    c2w = jax.random.normal(ks[2], (8, 4, 1, 1), f32) * 0.5
    c2b = jax.random.normal(ks[3], (8,), f32) * 0.1
    c3w = jax.random.normal(ks[4], (16, 8, 1, 1), f32) * 0.3
    c3b = jax.random.normal(ks[5], (16,), f32) * 0.1
    f1w = jax.random.normal(ks[6], (72, 288), f32) * 0.05
    f1b = jax.random.normal(ks[7], (72,), f32) * 0.1
    f2w = jax.random.normal(ks[8], (3, 72), f32) * 0.1
    f2b = jax.random.normal(ks[9], (3,), f32) * 0.1
    return (c1w, c1b, c2w, c2b, c3w, c3b, f1w, f1b, f2w, f2b)


if __name__ == "__main__":
    key = jax.random.PRNGKey(0)
    pkey, xkey = jax.random.split(key)
    params = make_params(pkey)

    # One-time prepack (hoisted out of the forward hot path).
    packed_w = jax.block_until_ready(prepack_params(params))

    # input: (N=1, C=1, H=7, W=4) so that 16 * 6 * 3 = 288 matches fc1.
    x = jax.random.normal(xkey, (1, 1, 7, 4), jnp.float32)

    out = jax.block_until_ready(cnn_forward(x, packed_w))
    ref = ref_forward(x, params)

    assert out.shape == (1, 3) and out.dtype == jnp.float32
    assert jnp.allclose(out, ref, rtol=1e-4, atol=1e-4), (out, ref)

    print("KERNEL_OK")
</pallas_src>

<mosaic_0001>
module attributes {stable_mosaic.version = 11 : i64} {
  func.func @cnn_kernel(%arg0: memref<24x128xf32, #tpu.memory_space<vmem>>, %arg1: memref<544x128xf32, #tpu.memory_space<vmem>>, %arg2: memref<1x128xf32, #tpu.memory_space<vmem>>) attributes {dimension_semantics = [], scalar_prefetch = 0 : i64, scratch_operands = 0 : i64, tpu.core_type = #tpu.core_type<tc>} {
    %c0 = arith.constant 0 : index
    %c0_0 = arith.constant 0 : index
    %0 = vector.load %arg0[%c0, %c0_0] : memref<24x128xf32, #tpu.memory_space<vmem>>, vector<24x128xf32>
    %1 = vector.extract_strided_slice %0 {offsets = [0, 0], sizes = [24, 1], strides = [1, 1]} : vector<24x128xf32> to vector<24x1xf32>
    %c8 = arith.constant 8 : index
    %c0_1 = arith.constant 0 : index
    %2 = vector.load %arg1[%c8, %c0_1] : memref<544x128xf32, #tpu.memory_space<vmem>>, vector<1x128xf32>
    %3 = vector.broadcast %1 : vector<24x1xf32> to vector<24x128xf32>
    %4 = vector.broadcast %2 : vector<1x128xf32> to vector<24x128xf32>
    %5 = arith.mulf %3, %4 : vector<24x128xf32>
    %6 = vector.extract_strided_slice %0 {offsets = [0, 1], sizes = [24, 1], strides = [1, 1]} : vector<24x128xf32> to vector<24x1xf32>
    %c9 = arith.constant 9 : index
    %c0_2 = arith.constant 0 : index
    %7 = vector.load %arg1[%c9, %c0_2] : memref<544x128xf32, #tpu.memory_space<vmem>>, vector<1x128xf32>
    %8 = vector.broadcast %6 : vector<24x1xf32> to vector<24x128xf32>
    %9 = vector.broadcast %7 : vector<1x128xf32> to vector<24x128xf32>
    %10 = arith.mulf %8, %9 : vector<24x128xf32>
    %11 = arith.addf %5, %10 : vector<24x128xf32>
    %12 = vector.extract_strided_slice %0 {offsets = [0, 2], sizes = [24, 1], strides = [1, 1]} : vector<24x128xf32> to vector<24x1xf32>
    %c10 = arith.constant 10 : index
    %c0_3 = arith.constant 0 : index
    %13 = vector.load %arg1[%c10, %c0_3] : memref<544x128xf32, #tpu.memory_space<vmem>>, vector<1x128xf32>
    %14 = vector.broadcast %12 : vector<24x1xf32> to vector<24x128xf32>
    %15 = vector.broadcast %13 : vector<1x128xf32> to vector<24x128xf32>
    %16 = arith.mulf %14, %15 : vector<24x128xf32>
    %17 = arith.addf %11, %16 : vector<24x128xf32>
    %18 = vector.extract_strided_slice %0 {offsets = [0, 3], sizes = [24, 1], strides = [1, 1]} : vector<24x128xf32> to vector<24x1xf32>
    %c11 = arith.constant 11 : index
    %c0_4 = arith.constant 0 : index
    %19 = vector.load %arg1[%c11, %c0_4] : memref<544x128xf32, #tpu.memory_space<vmem>>, vector<1x128xf32>
    %20 = vector.broadcast %18 : vector<24x1xf32> to vector<24x128xf32>
    %21 = vector.broadcast %19 : vector<1x128xf32> to vector<24x128xf32>
    %22 = arith.mulf %20, %21 : vector<24x128xf32>
    %23 = arith.addf %17, %22 : vector<24x128xf32>
    %c0_5 = arith.constant 0 : index
    %c0_6 = arith.constant 0 : index
    %24 = vector.load %arg1[%c0_5, %c0_6] : memref<544x128xf32, #tpu.memory_space<vmem>>, vector<1x128xf32>
    %25 = vector.broadcast %24 : vector<1x128xf32> to vector<24x128xf32>
    %26 = arith.addf %23, %25 : vector<24x128xf32>
    %cst = arith.constant 0.000000e+00 : f32
    %27 = vector.broadcast %cst : f32 to vector<24x128xf32>
    %28 = arith.cmpf oge, %26, %27 : vector<24x128xf32>
    %cst_7 = arith.constant 0.00999999977 : f32
    %29 = vector.broadcast %cst_7 : f32 to vector<24x128xf32>
    %30 = arith.mulf %29, %26 : vector<24x128xf32>
    %31 = arith.select %28, %26, %30 : vector<24x128xi1>, vector<24x128xf32>
    %32 = vector.extract_strided_slice %31 {offsets = [0, 0], sizes = [24, 1], strides = [1, 1]} : vector<24x128xf32> to vector<24x1xf32>
    %c16 = arith.constant 16 : index
    %c0_8 = arith.constant 0 : index
    %33 = vector.load %arg1[%c16, %c0_8] : memref<544x128xf32, #tpu.memory_space<vmem>>, vector<1x128xf32>
    %34 = vector.broadcast %32 : vector<24x1xf32> to vector<24x128xf32>
    %35 = vector.broadcast %33 : vector<1x128xf32> to vector<24x128xf32>
    %36 = arith.mulf %34, %35 : vector<24x128xf32>
    %37 = vector.extract_strided_slice %31 {offsets = [0, 1], sizes = [24, 1], strides = [1, 1]} : vector<24x128xf32> to vector<24x1xf32>
    %c17 = arith.constant 17 : index
    %c0_9 = arith.constant 0 : index
    %38 = vector.load %arg1[%c17, %c0_9] : memref<544x128xf32, #tpu.memory_space<vmem>>, vector<1x128xf32>
    %39 = vector.broadcast %37 : vector<24x1xf32> to vector<24x128xf32>
    %40 = vector.broadcast %38 : vector<1x128xf32> to vector<24x128xf32>
    %41 = arith.mulf %39, %40 : vector<24x128xf32>
    %42 = arith.addf %36, %41 : vector<24x128xf32>
    %43 = vector.extract_strided_slice %31 {offsets = [0, 2], sizes = [24, 1], strides = [1, 1]} : vector<24x128xf32> to vector<24x1xf32>
    %c18 = arith.constant 18 : index
    %c0_10 = arith.constant 0 : index
    %44 = vector.load %arg1[%c18, %c0_10] : memref<544x128xf32, #tpu.memory_space<vmem>>, vector<1x128xf32>
    %45 = vector.broadcast %43 : vector<24x1xf32> to vector<24x128xf32>
    %46 = vector.broadcast %44 : vector<1x128xf32> to vector<24x128xf32>
    %47 = arith.mulf %45, %46 : vector<24x128xf32>
    %48 = arith.addf %42, %47 : vector<24x128xf32>
    %49 = vector.extract_strided_slice %31 {offsets = [0, 3], sizes = [24, 1], strides = [1, 1]} : vector<24x128xf32> to vector<24x1xf32>
    %c19 = arith.constant 19 : index
    %c0_11 = arith.constant 0 : index
    %50 = vector.load %arg1[%c19, %c0_11] : memref<544x128xf32, #tpu.memory_space<vmem>>, vector<1x128xf32>
    %51 = vector.broadcast %49 : vector<24x1xf32> to vector<24x128xf32>
    %52 = vector.broadcast %50 : vector<1x128xf32> to vector<24x128xf32>
    %53 = arith.mulf %51, %52 : vector<24x128xf32>
    %54 = arith.addf %48, %53 : vector<24x128xf32>
    %c1 = arith.constant 1 : index
    %c0_12 = arith.constant 0 : index
    %55 = vector.load %arg1[%c1, %c0_12] : memref<544x128xf32, #tpu.memory_space<vmem>>, vector<1x128xf32>
    %56 = vector.broadcast %55 : vector<1x128xf32> to vector<24x128xf32>
    %57 = arith.addf %54, %56 : vector<24x128xf32>
    %cst_13 = arith.constant 0.000000e+00 : f32
    %58 = vector.broadcast %cst_13 : f32 to vector<24x128xf32>
    %59 = arith.cmpf oge, %57, %58 : vector<24x128xf32>
    %cst_14 = arith.constant 0.00999999977 : f32
    %60 = vector.broadcast %cst_14 : f32 to vector<24x128xf32>
    %61 = arith.mulf %60, %57 : vector<24x128xf32>
    %62 = arith.select %59, %57, %61 : vector<24x128xi1>, vector<24x128xf32>
    %63 = vector.extract_strided_slice %62 {offsets = [0, 0], sizes = [24, 1], strides = [1, 1]} : vector<24x128xf32> to vector<24x1xf32>
    %c24 = arith.constant 24 : index
    %c0_15 = arith.constant 0 : index
    %64 = vector.load %arg1[%c24, %c0_15] : memref<544x128xf32, #tpu.memory_space<vmem>>, vector<1x128xf32>
    %65 = vector.broadcast %63 : vector<24x1xf32> to vector<24x128xf32>
    %66 = vector.broadcast %64 : vector<1x128xf32> to vector<24x128xf32>
    %67 = arith.mulf %65, %66 : vector<24x128xf32>
    %68 = vector.extract_strided_slice %62 {offsets = [0, 1], sizes = [24, 1], strides = [1, 1]} : vector<24x128xf32> to vector<24x1xf32>
    %c25 = arith.constant 25 : index
    %c0_16 = arith.constant 0 : index
    %69 = vector.load %arg1[%c25, %c0_16] : memref<544x128xf32, #tpu.memory_space<vmem>>, vector<1x128xf32>
    %70 = vector.broadcast %68 : vector<24x1xf32> to vector<24x128xf32>
    %71 = vector.broadcast %69 : vector<1x128xf32> to vector<24x128xf32>
    %72 = arith.mulf %70, %71 : vector<24x128xf32>
    %73 = arith.addf %67, %72 : vector<24x128xf32>
    %74 = vector.extract_strided_slice %62 {offsets = [0, 2], sizes = [24, 1], strides = [1, 1]} : vector<24x128xf32> to vector<24x1xf32>
    %c26 = arith.constant 26 : index
    %c0_17 = arith.constant 0 : index
    %75 = vector.load %arg1[%c26, %c0_17] : memref<544x128xf32, #tpu.memory_space<vmem>>, vector<1x128xf32>
    %76 = vector.broadcast %74 : vector<24x1xf32> to vector<24x128xf32>
    %77 = vector.broadcast %75 : vector<1x128xf32> to vector<24x128xf32>
    %78 = arith.mulf %76, %77 : vector<24x128xf32>
    %79 = arith.addf %73, %78 : vector<24x128xf32>
    %80 = vector.extract_strided_slice %62 {offsets = [0, 3], sizes = [24, 1], strides = [1, 1]} : vector<24x128xf32> to vector<24x1xf32>
    %c27 = arith.constant 27 : index
    %c0_18 = arith.constant 0 : index
    %81 = vector.load %arg1[%c27, %c0_18] : memref<544x128xf32, #tpu.memory_space<vmem>>, vector<1x128xf32>
    %82 = vector.broadcast %80 : vector<24x1xf32> to vector<24x128xf32>
    %83 = vector.broadcast %81 : vector<1x128xf32> to vector<24x128xf32>
    %84 = arith.mulf %82, %83 : vector<24x128xf32>
    %85 = arith.addf %79, %84 : vector<24x128xf32>
    %86 = vector.extract_strided_slice %62 {offsets = [0, 4], sizes = [24, 1], strides = [1, 1]} : vector<24x128xf32> to vector<24x1xf32>
    %c28 = arith.constant 28 : index
    %c0_19 = arith.constant 0 : index
    %87 = vector.load %arg1[%c28, %c0_19] : memref<544x128xf32, #tpu.memory_space<vmem>>, vector<1x128xf32>
    %88 = vector.broadcast %86 : vector<24x1xf32> to vector<24x128xf32>
    %89 = vector.broadcast %87 : vector<1x128xf32> to vector<24x128xf32>
    %90 = arith.mulf %88, %89 : vector<24x128xf32>
    %91 = arith.addf %85, %90 : vector<24x128xf32>
    %92 = vector.extract_strided_slice %62 {offsets = [0, 5], sizes = [24, 1], strides = [1, 1]} : vector<24x128xf32> to vector<24x1xf32>
    %c29 = arith.constant 29 : index
    %c0_20 = arith.constant 0 : index
    %93 = vector.load %arg1[%c29, %c0_20] : memref<544x128xf32, #tpu.memory_space<vmem>>, vector<1x128xf32>
    %94 = vector.broadcast %92 : vector<24x1xf32> to vector<24x128xf32>
    %95 = vector.broadcast %93 : vector<1x128xf32> to vector<24x128xf32>
    %96 = arith.mulf %94, %95 : vector<24x128xf32>
    %97 = arith.addf %91, %96 : vector<24x128xf32>
    %98 = vector.extract_strided_slice %62 {offsets = [0, 6], sizes = [24, 1], strides = [1, 1]} : vector<24x128xf32> to vector<24x1xf32>
    %c30 = arith.constant 30 : index
    %c0_21 = arith.constant 0 : index
    %99 = vector.load %arg1[%c30, %c0_21] : memref<544x128xf32, #tpu.memory_space<vmem>>, vector<1x128xf32>
    %100 = vector.broadcast %98 : vector<24x1xf32> to vector<24x128xf32>
    %101 = vector.broadcast %99 : vector<1x128xf32> to vector<24x128xf32>
    %102 = arith.mulf %100, %101 : vector<24x128xf32>
    %103 = arith.addf %97, %102 : vector<24x128xf32>
    %104 = vector.extract_strided_slice %62 {offsets = [0, 7], sizes = [24, 1], strides = [1, 1]} : vector<24x128xf32> to vector<24x1xf32>
    %c31 = arith.constant 31 : index
    %c0_22 = arith.constant 0 : index
    %105 = vector.load %arg1[%c31, %c0_22] : memref<544x128xf32, #tpu.memory_space<vmem>>, vector<1x128xf32>
    %106 = vector.broadcast %104 : vector<24x1xf32> to vector<24x128xf32>
    %107 = vector.broadcast %105 : vector<1x128xf32> to vector<24x128xf32>
    %108 = arith.mulf %106, %107 : vector<24x128xf32>
    %109 = arith.addf %103, %108 : vector<24x128xf32>
    %c2 = arith.constant 2 : index
    %c0_23 = arith.constant 0 : index
    %110 = vector.load %arg1[%c2, %c0_23] : memref<544x128xf32, #tpu.memory_space<vmem>>, vector<1x128xf32>
    %111 = vector.broadcast %110 : vector<1x128xf32> to vector<24x128xf32>
    %112 = arith.addf %109, %111 : vector<24x128xf32>
    %cst_24 = arith.constant 0.000000e+00 : f32
    %113 = vector.broadcast %cst_24 : f32 to vector<24x128xf32>
    %114 = arith.cmpf oge, %112, %113 : vector<24x128xf32>
    %cst_25 = arith.constant 0.00999999977 : f32
    %115 = vector.broadcast %cst_25 : f32 to vector<24x128xf32>
    %116 = arith.mulf %115, %112 : vector<24x128xf32>
    %117 = arith.select %114, %112, %116 : vector<24x128xi1>, vector<24x128xf32>
    %118 = vector.extract_strided_slice %117 {offsets = [0, 0], sizes = [24, 1], strides = [1, 1]} : vector<24x128xf32> to vector<24x1xf32>
    %c160 = arith.constant 160 : index
    %c0_26 = arith.constant 0 : index
    %119 = vector.load %arg1[%c160, %c0_26] : memref<544x128xf32, #tpu.memory_space<vmem>>, vector<24x128xf32>
    %120 = vector.broadcast %118 : vector<24x1xf32> to vector<24x128xf32>
    %121 = arith.mulf %120, %119 : vector<24x128xf32>
    %122 = vector.extract_strided_slice %117 {offsets = [0, 1], sizes = [24, 1], strides = [1, 1]} : vector<24x128xf32> to vector<24x1xf32>
    %c184 = arith.constant 184 : index
    %c0_27 = arith.constant 0 : index
    %123 = vector.load %arg1[%c184, %c0_27] : memref<544x128xf32, #tpu.memory_space<vmem>>, vector<24x128xf32>
    %124 = vector.broadcast %122 : vector<24x1xf32> to vector<24x128xf32>
    %125 = arith.mulf %124, %123 : vector<24x128xf32>
    %126 = arith.addf %121, %125 : vector<24x128xf32>
    %127 = vector.extract_strided_slice %117 {offsets = [0, 2], sizes = [24, 1], strides = [1, 1]} : vector<24x128xf32> to vector<24x1xf32>
    %c208 = arith.constant 208 : index
    %c0_28 = arith.constant 0 : index
    %128 = vector.load %arg1[%c208, %c0_28] : memref<544x128xf32, #tpu.memory_space<vmem>>, vector<24x128xf32>
    %129 = vector.broadcast %127 : vector<24x1xf32> to vector<24x128xf32>
    %130 = arith.mulf %129, %128 : vector<24x128xf32>
    %131 = arith.addf %126, %130 : vector<24x128xf32>
    %132 = vector.extract_strided_slice %117 {offsets = [0, 3], sizes = [24, 1], strides = [1, 1]} : vector<24x128xf32> to vector<24x1xf32>
    %c232 = arith.constant 232 : index
    %c0_29 = arith.constant 0 : index
    %133 = vector.load %arg1[%c232, %c0_29] : memref<544x128xf32, #tpu.memory_space<vmem>>, vector<24x128xf32>
    %134 = vector.broadcast %132 : vector<24x1xf32> to vector<24x128xf32>
    %135 = arith.mulf %134, %133 : vector<24x128xf32>
    %136 = arith.addf %131, %135 : vector<24x128xf32>
    %137 = vector.extract_strided_slice %117 {offsets = [0, 4], sizes = [24, 1], strides = [1, 1]} : vector<24x128xf32> to vector<24x1xf32>
    %c256 = arith.constant 256 : index
    %c0_30 = arith.constant 0 : index
    %138 = vector.load %arg1[%c256, %c0_30] : memref<544x128xf32, #tpu.memory_space<vmem>>, vector<24x128xf32>
    %139 = vector.broadcast %137 : vector<24x1xf32> to vector<24x128xf32>
    %140 = arith.mulf %139, %138 : vector<24x128xf32>
    %141 = arith.addf %136, %140 : vector<24x128xf32>
    %142 = vector.extract_strided_slice %117 {offsets = [0, 5], sizes = [24, 1], strides = [1, 1]} : vector<24x128xf32> to vector<24x1xf32>
    %c280 = arith.constant 280 : index
    %c0_31 = arith.constant 0 : index
    %143 = vector.load %arg1[%c280, %c0_31] : memref<544x128xf32, #tpu.memory_space<vmem>>, vector<24x128xf32>
    %144 = vector.broadcast %142 : vector<24x1xf32> to vector<24x128xf32>
    %145 = arith.mulf %144, %143 : vector<24x128xf32>
    %146 = arith.addf %141, %145 : vector<24x128xf32>
    %147 = vector.extract_strided_slice %117 {offsets = [0, 6], sizes = [24, 1], strides = [1, 1]} : vector<24x128xf32> to vector<24x1xf32>
    %c304 = arith.constant 304 : index
    %c0_32 = arith.constant 0 : index
    %148 = vector.load %arg1[%c304, %c0_32] : memref<544x128xf32, #tpu.memory_space<vmem>>, vector<24x128xf32>
    %149 = vector.broadcast %147 : vector<24x1xf32> to vector<24x128xf32>
    %150 = arith.mulf %149, %148 : vector<24x128xf32>
    %151 = arith.addf %146, %150 : vector<24x128xf32>
    %152 = vector.extract_strided_slice %117 {offsets = [0, 7], sizes = [24, 1], strides = [1, 1]} : vector<24x128xf32> to vector<24x1xf32>
    %c328 = arith.constant 328 : index
    %c0_33 = arith.constant 0 : index
    %153 = vector.load %arg1[%c328, %c0_33] : memref<544x128xf32, #tpu.memory_space<vmem>>, vector<24x128xf32>
    %154 = vector.broadcast %152 : vector<24x1xf32> to vector<24x128xf32>
    %155 = arith.mulf %154, %153 : vector<24x128xf32>
    %156 = arith.addf %151, %155 : vector<24x128xf32>
    %157 = vector.extract_strided_slice %117 {offsets = [0, 8], sizes = [24, 1], strides = [1, 1]} : vector<24x128xf32> to vector<24x1xf32>
    %c352 = arith.constant 352 : index
    %c0_34 = arith.constant 0 : index
    %158 = vector.load %arg1[%c352, %c0_34] : memref<544x128xf32, #tpu.memory_space<vmem>>, vector<24x128xf32>
    %159 = vector.broadcast %157 : vector<24x1xf32> to vector<24x128xf32>
    %160 = arith.mulf %159, %158 : vector<24x128xf32>
    %161 = arith.addf %156, %160 : vector<24x128xf32>
    %162 = vector.extract_strided_slice %117 {offsets = [0, 9], sizes = [24, 1], strides = [1, 1]} : vector<24x128xf32> to vector<24x1xf32>
    %c376 = arith.constant 376 : index
    %c0_35 = arith.constant 0 : index
    %163 = vector.load %arg1[%c376, %c0_35] : memref<544x128xf32, #tpu.memory_space<vmem>>, vector<24x128xf32>
    %164 = vector.broadcast %162 : vector<24x1xf32> to vector<24x128xf32>
    %165 = arith.mulf %164, %163 : vector<24x128xf32>
    %166 = arith.addf %161, %165 : vector<24x128xf32>
    %167 = vector.extract_strided_slice %117 {offsets = [0, 10], sizes = [24, 1], strides = [1, 1]} : vector<24x128xf32> to vector<24x1xf32>
    %c400 = arith.constant 400 : index
    %c0_36 = arith.constant 0 : index
    %168 = vector.load %arg1[%c400, %c0_36] : memref<544x128xf32, #tpu.memory_space<vmem>>, vector<24x128xf32>
    %169 = vector.broadcast %167 : vector<24x1xf32> to vector<24x128xf32>
    %170 = arith.mulf %169, %168 : vector<24x128xf32>
    %171 = arith.addf %166, %170 : vector<24x128xf32>
    %172 = vector.extract_strided_slice %117 {offsets = [0, 11], sizes = [24, 1], strides = [1, 1]} : vector<24x128xf32> to vector<24x1xf32>
    %c424 = arith.constant 424 : index
    %c0_37 = arith.constant 0 : index
    %173 = vector.load %arg1[%c424, %c0_37] : memref<544x128xf32, #tpu.memory_space<vmem>>, vector<24x128xf32>
    %174 = vector.broadcast %172 : vector<24x1xf32> to vector<24x128xf32>
    %175 = arith.mulf %174, %173 : vector<24x128xf32>
    %176 = arith.addf %171, %175 : vector<24x128xf32>
    %177 = vector.extract_strided_slice %117 {offsets = [0, 12], sizes = [24, 1], strides = [1, 1]} : vector<24x128xf32> to vector<24x1xf32>
    %c448 = arith.constant 448 : index
    %c0_38 = arith.constant 0 : index
    %178 = vector.load %arg1[%c448, %c0_38] : memref<544x128xf32, #tpu.memory_space<vmem>>, vector<24x128xf32>
    %179 = vector.broadcast %177 : vector<24x1xf32> to vector<24x128xf32>
    %180 = arith.mulf %179, %178 : vector<24x128xf32>
    %181 = arith.addf %176, %180 : vector<24x128xf32>
    %182 = vector.extract_strided_slice %117 {offsets = [0, 13], sizes = [24, 1], strides = [1, 1]} : vector<24x128xf32> to vector<24x1xf32>
    %c472 = arith.constant 472 : index
    %c0_39 = arith.constant 0 : index
    %183 = vector.load %arg1[%c472, %c0_39] : memref<544x128xf32, #tpu.memory_space<vmem>>, vector<24x128xf32>
    %184 = vector.broadcast %182 : vector<24x1xf32> to vector<24x128xf32>
    %185 = arith.mulf %184, %183 : vector<24x128xf32>
    %186 = arith.addf %181, %185 : vector<24x128xf32>
    %187 = vector.extract_strided_slice %117 {offsets = [0, 14], sizes = [24, 1], strides = [1, 1]} : vector<24x128xf32> to vector<24x1xf32>
    %c496 = arith.constant 496 : index
    %c0_40 = arith.constant 0 : index
    %188 = vector.load %arg1[%c496, %c0_40] : memref<544x128xf32, #tpu.memory_space<vmem>>, vector<24x128xf32>
    %189 = vector.broadcast %187 : vector<24x1xf32> to vector<24x128xf32>
    %190 = arith.mulf %189, %188 : vector<24x128xf32>
    %191 = arith.addf %186, %190 : vector<24x128xf32>
    %192 = vector.extract_strided_slice %117 {offsets = [0, 15], sizes = [24, 1], strides = [1, 1]} : vector<24x128xf32> to vector<24x1xf32>
    %c520 = arith.constant 520 : index
    %c0_41 = arith.constant 0 : index
    %193 = vector.load %arg1[%c520, %c0_41] : memref<544x128xf32, #tpu.memory_space<vmem>>, vector<24x128xf32>
    %194 = vector.broadcast %192 : vector<24x1xf32> to vector<24x128xf32>
    %195 = arith.mulf %194, %193 : vector<24x128xf32>
    %196 = arith.addf %191, %195 : vector<24x128xf32>
    %c3 = arith.constant 3 : index
    %c0_42 = arith.constant 0 : index
    %197 = vector.load %arg1[%c3, %c0_42] : memref<544x128xf32, #tpu.memory_space<vmem>>, vector<1x128xf32>
    %cst_43 = arith.constant dense<0.000000e+00> : vector<128xf32>
    %198 = vector.multi_reduction <add>, %196, %cst_43 [0] : vector<24x128xf32> to vector<128xf32>
    %199 = vector.shape_cast %198 : vector<128xf32> to vector<1x128xf32>
    %200 = arith.addf %197, %199 : vector<1x128xf32>
    %cst_44 = arith.constant 0.000000e+00 : f32
    %201 = vector.broadcast %cst_44 : f32 to vector<1x128xf32>
    %202 = arith.cmpf oge, %200, %201 : vector<1x128xf32>
    %cst_45 = arith.constant 0.00999999977 : f32
    %203 = vector.broadcast %cst_45 : f32 to vector<1x128xf32>
    %204 = arith.mulf %203, %200 : vector<1x128xf32>
    %205 = arith.select %202, %200, %204 : vector<1x128xi1>, vector<1x128xf32>
    %c32 = arith.constant 32 : index
    %c0_46 = arith.constant 0 : index
    %206 = vector.load %arg1[%c32, %c0_46] : memref<544x128xf32, #tpu.memory_space<vmem>>, vector<128x128xf32>
    %cst_47 = arith.constant dense<0.000000e+00> : vector<1x128xf32>
    %207 = tpu.matmul %205, %206, %cst_47 {dimension_numbers = #tpu.dot_dimension_numbers<[1], [0], [0], [1], [0, 0, 1, 1], [], []>, precision = #tpu.contract_precision<fp32>} : vector<1x128xf32>, vector<128x128xf32>, vector<1x128xf32> -> vector<1x128xf32>
    %c4 = arith.constant 4 : index
    %c0_48 = arith.constant 0 : index
    %208 = vector.load %arg1[%c4, %c0_48] : memref<544x128xf32, #tpu.memory_space<vmem>>, vector<1x128xf32>
    %209 = arith.addf %207, %208 : vector<1x128xf32>
    %cst_49 = arith.constant dense<0xFF800000> : vector<1xf32>
    %210 = vector.multi_reduction <maximumf>, %209, %cst_49 [1] : vector<1x128xf32> to vector<1xf32>
    %211 = vector.shape_cast %210 : vector<1xf32> to vector<1x1xf32>
    %212 = vector.broadcast %211 : vector<1x1xf32> to vector<1x128xf32>
    %213 = arith.subf %209, %212 : vector<1x128xf32>
    %214 = math.exp %213 : vector<1x128xf32>
    %cst_50 = arith.constant dense<0.000000e+00> : vector<1xf32>
    %215 = vector.multi_reduction <add>, %214, %cst_50 [1] : vector<1x128xf32> to vector<1xf32>
    %216 = vector.shape_cast %215 : vector<1xf32> to vector<1x1xf32>
    %217 = math.log %216 : vector<1x1xf32>
    %218 = vector.broadcast %217 : vector<1x1xf32> to vector<1x128xf32>
    %219 = arith.subf %213, %218 : vector<1x128xf32>
    %c0_51 = arith.constant 0 : index
    %c0_52 = arith.constant 0 : index
    %220 = vector.load %arg2[%c0_51, %c0_52] : memref<1x128xf32, #tpu.memory_space<vmem>>, vector<1x128xf32>
    tpu.vector_store %arg2[%c0_51, %c0_52], %219 {strides = array<i32>} : memref<1x128xf32, #tpu.memory_space<vmem>>, vector<1x128xf32>,
    return
  }
}

</mosaic_0001>

<llo_original>
// kernel: cnn_forward.1
$region0: #{cnn_forward.1}
  #allocation0 [shape = 'u32[]', space=smem, size = 0x4, offset = 0x4, fixed_abs, tag = 'smem constant byte address 0x4 - core index']
  #allocation1 [shape = 'u32[72,128]{1,0:T(1,128)}', space=vmem, size = 0x9000, scoped, tag = 'internal scratch']
  %s0 = inlined_call_operand.vmem [shape: f32[24,128], index: 0, kind: input, shape index: {}]
  %s1 = inlined_call_operand.hbm [shape: f32[544,128], index: 1, kind: input, shape index: {}]
  %s2 = inlined_call_operand.hbm [shape: f32[1,128], index: 2, kind: output, shape index: {}]
  %s3 = sld [smem:[#allocation0]]
  $region22: #{cnn_forward.1} parent=0
    _
  %s5 = ssub.s32 1, %s3
  %s6 = scalar_select 0, %s5, %s3
  $region1: #{cnn_forward.1} parent=0
    #allocation2 [shape = 'u8[278528]{0}', space=vmem, size = 0x44000, scoped, tag = 'input window, operand 1, single buffered']
    #allocation3 [shape = 's32[1]{0}', space=sflag, size = 0x4, scoped, tag = 'scoped memory for cnn_forward.1']
    #allocation4 [shape = 's32[1]{0}', space=sflag, size = 0x4, scoped, tag = 'scoped memory for cnn_forward.1']
    #allocation5 [shape = 'u8[512]{0}', space=vmem, size = 0x400, scoped, tag = 'output window, operand 0, single buffered']
    %7 = vsyncpa [#allocation3], 0
    %8 = vsyncpa [#allocation4], 0
    // Predicated region
    $region2: #{cnn_forward.1} parent=1 // pred_check
      _
    $region3: #{cnn_forward.1} parent=1 // pred_check_branch
      %10 = sbr.rel (0) target = $region5
    $region4: #{cnn_forward.1} parent=1 // pred_region
      _
    $region5: #{cnn_forward.1} parent=1 // pred_fallthru
      _
    // Predicated region
    $region6: #{cnn_forward.1} parent=1 // pred_check
      _
    $region7: #{cnn_forward.1} parent=1 // pred_check_branch
      %12 = sbr.rel (0) target = $region9
    $region8: #{cnn_forward.1} parent=1 // pred_region
      %14 = vsyncadd [#allocation3], 0
      %s15 = sshll.u32 %s1, 4
      %s16 = int_to_ptr.hbm [resolvable:$true] %s15
      %s17 = sshll.u32 [#allocation2], 4
      %s18 = int_to_ptr.vmem [resolvable:$true] %s17
      %23 = dma.hbm_to_vmem [thread:$0]  %s16, 8704, %s18, [#allocation3], 128, 128, 8
    $region9: #{cnn_forward.1} parent=1 // pred_fallthru
      _
    // Predicated region
    $region10: #{cnn_forward.1} parent=1 // pred_check
      _
    $region11: #{cnn_forward.1} parent=1 // pred_check_branch
      %25 = sbr.rel (0) target = $region13
    $region12: #{cnn_forward.1} parent=1 // pred_region
      %27 = dma.done [#allocation3], 8704
    $region13: #{cnn_forward.1} parent=1 // pred_fallthru
      _
    %v28 = vld [vmem:[%s0] sm:$0xff]
    %v29 = vld [vmem:[%s0 + $0x8] sm:$0xff]
    %v30 = vld [vmem:[%s0 + $0x10] sm:$0xff]
    %v31 = vld [vmem:[#allocation2 + $0x8] sm:$0x1]
    %33 = vset.pattern.permute.xlu0 0
    %34 = vperm.xlu0 %33, %v28
    %v35 = vpop.permute.xlu0 %34
    %38 = vset.pattern.permute.xlu0 0
    %39 = vperm.xlu0 %38, %v29
    %v40 = vpop.permute.xlu0 %39
    %43 = vset.pattern.permute.xlu0 0
    %44 = vperm.xlu0 %43, %v30
    %v45 = vpop.permute.xlu0 %44
    %v47 = vperm.slane %v31, 0
    %v48 = vmul.f32 %v35, %v47
    %v49 = vmul.f32 %v40, %v47
    %v50 = vmul.f32 %v45, %v47
    %v51 = vld [vmem:[#allocation2 + $0x9] sm:$0x1]
    %52 = vset.pattern.permute.xlu0 1
    %53 = vperm.xlu0 %52, %v28
    %v54 = vpop.permute.xlu0 %53
    %56 = vset.pattern.permute.xlu0 1
    %57 = vperm.xlu0 %56, %v29
    %v58 = vpop.permute.xlu0 %57
    %60 = vset.pattern.permute.xlu0 1
    %61 = vperm.xlu0 %60, %v30
    %v62 = vpop.permute.xlu0 %61
    %v64 = vperm.slane %v51, 0
    %v65 = vmul.f32 %v54, %v64
    %v66 = vmul.f32 %v58, %v64
    %v67 = vmul.f32 %v62, %v64
    %v68 = vadd.f32 %v48, %v65
    %v69 = vadd.f32 %v49, %v66
    %v70 = vadd.f32 %v50, %v67
    %v71 = vld [vmem:[#allocation2 + $0xa] sm:$0x1]
    %72 = vset.pattern.permute.xlu0 2
    %73 = vperm.xlu0 %72, %v28
    %v74 = vpop.permute.xlu0 %73
    %76 = vset.pattern.permute.xlu0 2
    %77 = vperm.xlu0 %76, %v29
    %v78 = vpop.permute.xlu0 %77
    %80 = vset.pattern.permute.xlu0 2
    %81 = vperm.xlu0 %80, %v30
    %v82 = vpop.permute.xlu0 %81
    %v84 = vperm.slane %v71, 0
    %v85 = vmul.f32 %v74, %v84
    %v86 = vmul.f32 %v78, %v84
    %v87 = vmul.f32 %v82, %v84
    %v88 = vadd.f32 %v68, %v85
    %v89 = vadd.f32 %v69, %v86
    %v90 = vadd.f32 %v70, %v87
    %v91 = vld [vmem:[#allocation2 + $0xb] sm:$0x1]
    %92 = vset.pattern.permute.xlu0 3
    %93 = vperm.xlu0 %92, %v28
    %v94 = vpop.permute.xlu0 %93
    %96 = vset.pattern.permute.xlu0 3
    %97 = vperm.xlu0 %96, %v29
    %v98 = vpop.permute.xlu0 %97
    %100 = vset.pattern.permute.xlu0 3
    %101 = vperm.xlu0 %100, %v30
    %v102 = vpop.permute.xlu0 %101
    %v104 = vperm.slane %v91, 0
    %v105 = vmul.f32 %v94, %v104
    %v106 = vmul.f32 %v98, %v104
    %v107 = vmul.f32 %v102, %v104
    %v108 = vadd.f32 %v88, %v105
    %v109 = vadd.f32 %v89, %v106
    %v110 = vadd.f32 %v90, %v107
    %v111 = vld [vmem:[#allocation2] sm:$0x1]
    %v112 = vperm.slane %v111, 0
    %v113 = vadd.f32 %v108, %v112
    %v114 = vadd.f32 %v109, %v112
    %v115 = vadd.f32 %v110, %v112
    %vm116 = vcmp.ge.f32.partialorder %v113, 0.0
    %vm117 = vcmp.ge.f32.partialorder %v114, 0.0
    %vm118 = vcmp.ge.f32.partialorder %v115, 0.0
    %v119 = vmul.f32 %v113, 0.01
    %v120 = vmul.f32 %v114, 0.01
    %v121 = vmul.f32 %v115, 0.01
    %v122 = vsel %vm116, %v113, %v119
    %v123 = vsel %vm117, %v114, %v120
    %v124 = vsel %vm118, %v115, %v121
    %v125 = vld [vmem:[#allocation2 + $0x10] sm:$0x1]
    %127 = vset.pattern.permute.xlu0 0
    %128 = vperm.xlu0 %127, %v122
    %v129 = vpop.permute.xlu0 %128
    %132 = vset.pattern.permute.xlu0 0
    %133 = vperm.xlu0 %132, %v123
    %v134 = vpop.permute.xlu0 %133
    %137 = vset.pattern.permute.xlu0 0
    %138 = vperm.xlu0 %137, %v124
    %v139 = vpop.permute.xlu0 %138
    %v141 = vperm.slane %v125, 0
    %v142 = vmul.f32 %v129, %v141
    %v143 = vmul.f32 %v134, %v141
    %v144 = vmul.f32 %v139, %v141
    %v145 = vld [vmem:[#allocation2 + $0x11] sm:$0x1]
    %146 = vset.pattern.permute.xlu0 1
    %147 = vperm.xlu0 %146, %v122
    %v148 = vpop.permute.xlu0 %147
    %150 = vset.pattern.permute.xlu0 1
    %151 = vperm.xlu0 %150, %v123
    %v152 = vpop.permute.xlu0 %151
    %154 = vset.pattern.permute.xlu0 1
    %155 = vperm.xlu0 %154, %v124
    %v156 = vpop.permute.xlu0 %155
    %v158 = vperm.slane %v145, 0
    %v159 = vmul.f32 %v148, %v158
    %v160 = vmul.f32 %v152, %v158
    %v161 = vmul.f32 %v156, %v158
    %v162 = vadd.f32 %v142, %v159
    %v163 = vadd.f32 %v143, %v160
    %v164 = vadd.f32 %v144, %v161
    %v165 = vld [vmem:[#allocation2 + $0x12] sm:$0x1]
    %166 = vset.pattern.permute.xlu0 2
    %167 = vperm.xlu0 %166, %v122
    %v168 = vpop.permute.xlu0 %167
    %170 = vset.pattern.permute.xlu0 2
    %171 = vperm.xlu0 %170, %v123
    %v172 = vpop.permute.xlu0 %171
    %174 = vset.pattern.permute.xlu0 2
    %175 = vperm.xlu0 %174, %v124
    %v176 = vpop.permute.xlu0 %175
    %v178 = vperm.slane %v165, 0
    %v179 = vmul.f32 %v168, %v178
    %v180 = vmul.f32 %v172, %v178
    %v181 = vmul.f32 %v176, %v178
    %v182 = vadd.f32 %v162, %v179
    %v183 = vadd.f32 %v163, %v180
    %v184 = vadd.f32 %v164, %v181
    %v185 = vld [vmem:[#allocation2 + $0x13] sm:$0x1]
    %186 = vset.pattern.permute.xlu0 3
    %187 = vperm.xlu0 %186, %v122
    %v188 = vpop.permute.xlu0 %187
    %190 = vset.pattern.permute.xlu0 3
    %191 = vperm.xlu0 %190, %v123
    %v192 = vpop.permute.xlu0 %191
    %194 = vset.pattern.permute.xlu0 3
    %195 = vperm.xlu0 %194, %v124
    %v196 = vpop.permute.xlu0 %195
    %v198 = vperm.slane %v185, 0
    %v199 = vmul.f32 %v188, %v198
    %v200 = vmul.f32 %v192, %v198
    %v201 = vmul.f32 %v196, %v198
    %v202 = vadd.f32 %v182, %v199
    %v203 = vadd.f32 %v183, %v200
    %v204 = vadd.f32 %v184, %v201
    %v205 = vld [vmem:[#allocation2 + $0x1] sm:$0x1]
    %v206 = vperm.slane %v205, 0
    %v207 = vadd.f32 %v202, %v206
    %v208 = vadd.f32 %v203, %v206
    %v209 = vadd.f32 %v204, %v206
    %vm210 = vcmp.ge.f32.partialorder %v207, 0.0
    %vm211 = vcmp.ge.f32.partialorder %v208, 0.0
    %vm212 = vcmp.ge.f32.partialorder %v209, 0.0
    %v213 = vmul.f32 %v207, 0.01
    %v214 = vmul.f32 %v208, 0.01
    %v215 = vmul.f32 %v209, 0.01
    %v216 = vsel %vm210, %v207, %v213
    %v217 = vsel %vm211, %v208, %v214
    %v218 = vsel %vm212, %v209, %v215
    %v219 = vld [vmem:[#allocation2 + $0x18] sm:$0x1]
    %221 = vset.pattern.permute.xlu0 0
    %222 = vperm.xlu0 %221, %v216
    %v223 = vpop.permute.xlu0 %222
    %226 = vset.pattern.permute.xlu0 0
    %227 = vperm.xlu0 %226, %v217
    %v228 = vpop.permute.xlu0 %227
    %231 = vset.pattern.permute.xlu0 0
    %232 = vperm.xlu0 %231, %v218
    %v233 = vpop.permute.xlu0 %232
    %v235 = vperm.slane %v219, 0
    %v236 = vmul.f32 %v223, %v235
    %v237 = vmul.f32 %v228, %v235
    %v238 = vmul.f32 %v233, %v235
    %v239 = vld [vmem:[#allocation2 + $0x19] sm:$0x1]
    %240 = vset.pattern.permute.xlu0 1
    %241 = vperm.xlu0 %240, %v216
    %v242 = vpop.permute.xlu0 %241
    %244 = vset.pattern.permute.xlu0 1
    %245 = vperm.xlu0 %244, %v217
    %v246 = vpop.permute.xlu0 %245
    %248 = vset.pattern.permute.xlu0 1
    %249 = vperm.xlu0 %248, %v218
    %v250 = vpop.permute.xlu0 %249
    %v252 = vperm.slane %v239, 0
    %v253 = vmul.f32 %v242, %v252
    %v254 = vmul.f32 %v246, %v252
    %v255 = vmul.f32 %v250, %v252
    %v256 = vadd.f32 %v236, %v253
    %v257 = vadd.f32 %v237, %v254
    %v258 = vadd.f32 %v238, %v255
    %v259 = vld [vmem:[#allocation2 + $0x1a] sm:$0x1]
    %260 = vset.pattern.permute.xlu0 2
    %261 = vperm.xlu0 %260, %v216
    %v262 = vpop.permute.xlu0 %261
    %264 = vset.pattern.permute.xlu0 2
    %265 = vperm.xlu0 %264, %v217
    %v266 = vpop.permute.xlu0 %265
    %268 = vset.pattern.permute.xlu0 2
    %269 = vperm.xlu0 %268, %v218
    %v270 = vpop.permute.xlu0 %269
    %v272 = vperm.slane %v259, 0
    %v273 = vmul.f32 %v262, %v272
    %v274 = vmul.f32 %v266, %v272
    %v275 = vmul.f32 %v270, %v272
    %v276 = vadd.f32 %v256, %v273
    %v277 = vadd.f32 %v257, %v274
    %v278 = vadd.f32 %v258, %v275
    %v279 = vld [vmem:[#allocation2 + $0x1b] sm:$0x1]
    %280 = vset.pattern.permute.xlu0 3
    %281 = vperm.xlu0 %280, %v216
    %v282 = vpop.permute.xlu0 %281
    %284 = vset.pattern.permute.xlu0 3
    %285 = vperm.xlu0 %284, %v217
    %v286 = vpop.permute.xlu0 %285
    %288 = vset.pattern.permute.xlu0 3
    %289 = vperm.xlu0 %288, %v218
    %v290 = vpop.permute.xlu0 %289
    %v292 = vperm.slane %v279, 0
    %v293 = vmul.f32 %v282, %v292
    %v294 = vmul.f32 %v286, %v292
    %v295 = vmul.f32 %v290, %v292
    %v296 = vadd.f32 %v276, %v293
    %v297 = vadd.f32 %v277, %v294
    %v298 = vadd.f32 %v278, %v295
    %v299 = vld [vmem:[#allocation2 + $0x1c] sm:$0x1]
    %300 = vset.pattern.permute.xlu0 4
    %301 = vperm.xlu0 %300, %v216
    %v302 = vpop.permute.xlu0 %301
    %304 = vset.pattern.permute.xlu0 4
    %305 = vperm.xlu0 %304, %v217
    %v306 = vpop.permute.xlu0 %305
    %308 = vset.pattern.permute.xlu0 4
    %309 = vperm.xlu0 %308, %v218
    %v310 = vpop.permute.xlu0 %309
    %v312 = vperm.slane %v299, 0
    %v313 = vmul.f32 %v302, %v312
    %v314 = vmul.f32 %v306, %v312
    %v315 = vmul.f32 %v310, %v312
    %v316 = vadd.f32 %v296, %v313
    %v317 = vadd.f32 %v297, %v314
    %v318 = vadd.f32 %v298, %v315
    %v319 = vld [vmem:[#allocation2 + $0x1d] sm:$0x1]
    %320 = vset.pattern.permute.xlu0 5
    %321 = vperm.xlu0 %320, %v216
    %v322 = vpop.permute.xlu0 %321
    %324 = vset.pattern.permute.xlu0 5
    %325 = vperm.xlu0 %324, %v217
    %v326 = vpop.permute.xlu0 %325
    %328 = vset.pattern.permute.xlu0 5
    %329 = vperm.xlu0 %328, %v218
    %v330 = vpop.permute.xlu0 %329
    %v332 = vperm.slane %v319, 0
    %v333 = vmul.f32 %v322, %v332
    %v334 = vmul.f32 %v326, %v332
    %v335 = vmul.f32 %v330, %v332
    %v336 = vadd.f32 %v316, %v333
    %v337 = vadd.f32 %v317, %v334
    %v338 = vadd.f32 %v318, %v335
    %v339 = vld [vmem:[#allocation2 + $0x1e] sm:$0x1]
    %340 = vset.pattern.permute.xlu0 6
    %341 = vperm.xlu0 %340, %v216
    %v342 = vpop.permute.xlu0 %341
    %344 = vset.pattern.permute.xlu0 6
    %345 = vperm.xlu0 %344, %v217
    %v346 = vpop.permute.xlu0 %345
    %348 = vset.pattern.permute.xlu0 6
    %349 = vperm.xlu0 %348, %v218
    %v350 = vpop.permute.xlu0 %349
    %v352 = vperm.slane %v339, 0
    %v353 = vmul.f32 %v342, %v352
    %v354 = vmul.f32 %v346, %v352
    %v355 = vmul.f32 %v350, %v352
    %v356 = vadd.f32 %v336, %v353
    %v357 = vadd.f32 %v337, %v354
    %v358 = vadd.f32 %v338, %v355
    %v359 = vld [vmem:[#allocation2 + $0x1f] sm:$0x1]
    %360 = vset.pattern.permute.xlu0 7
    %361 = vperm.xlu0 %360, %v216
    %v362 = vpop.permute.xlu0 %361
    %364 = vset.pattern.permute.xlu0 7
    %365 = vperm.xlu0 %364, %v217
    %v366 = vpop.permute.xlu0 %365
    %368 = vset.pattern.permute.xlu0 7
    %369 = vperm.xlu0 %368, %v218
    %v370 = vpop.permute.xlu0 %369
    %v372 = vperm.slane %v359, 0
    %v373 = vmul.f32 %v362, %v372
    %v374 = vmul.f32 %v366, %v372
    %v375 = vmul.f32 %v370, %v372
    %v376 = vadd.f32 %v356, %v373
    %v377 = vadd.f32 %v357, %v374
    %v378 = vadd.f32 %v358, %v375
    %v379 = vld [vmem:[#allocation2 + $0x2] sm:$0x1]
    %v380 = vperm.slane %v379, 0
    %v381 = vadd.f32 %v376, %v380
    %v382 = vadd.f32 %v377, %v380
    %v383 = vadd.f32 %v378, %v380
    %vm384 = vcmp.ge.f32.partialorder %v381, 0.0
    %vm385 = vcmp.ge.f32.partialorder %v382, 0.0
    %vm386 = vcmp.ge.f32.partialorder %v383, 0.0
    %v387 = vmul.f32 %v381, 0.01
    %v388 = vmul.f32 %v382, 0.01
    %v389 = vmul.f32 %v383, 0.01
    %v390 = vsel %vm384, %v381, %v387
    %v391 = vsel %vm385, %v382, %v388
    %v392 = vsel %vm386, %v383, %v389
    %v393 = vld [vmem:[#allocation2 + $0xa0] sm:$0xff]
    %v394 = vld [vmem:[#allocation2 + $0xa8] sm:$0xff]
    %v395 = vld [vmem:[#allocation2 + $0xb0] sm:$0xff]
    %397 = vset.pattern.permute.xlu0 0
    %398 = vperm.xlu0 %397, %v390
    %v399 = vpop.permute.xlu0 %398
    %402 = vset.pattern.permute.xlu0 0
    %403 = vperm.xlu0 %402, %v391
    %v404 = vpop.permute.xlu0 %403
    %407 = vset.pattern.permute.xlu0 0
    %408 = vperm.xlu0 %407, %v392
    %v409 = vpop.permute.xlu0 %408
    %v411 = vmul.f32 %v399, %v393
    %v412 = vmul.f32 %v404, %v394
    %v413 = vmul.f32 %v409, %v395
    %v414 = vld [vmem:[#allocation2 + $0xb8] sm:$0xff]
    %v415 = vld [vmem:[#allocation2 + $0xc0] sm:$0xff]
    %v416 = vld [vmem:[#allocation2 + $0xc8] sm:$0xff]
    %417 = vset.pattern.permute.xlu0 1
    %418 = vperm.xlu0 %417, %v390
    %v419 = vpop.permute.xlu0 %418
    %421 = vset.pattern.permute.xlu0 1
    %422 = vperm.xlu0 %421, %v391
    %v423 = vpop.permute.xlu0 %422
    %425 = vset.pattern.permute.xlu0 1
    %426 = vperm.xlu0 %425, %v392
    %v427 = vpop.permute.xlu0 %426
    %v429 = vmul.f32 %v419, %v414
    %v430 = vmul.f32 %v423, %v415
    %v431 = vmul.f32 %v427, %v416
    %v432 = vadd.f32 %v411, %v429
    %v433 = vadd.f32 %v412, %v430
    %v434 = vadd.f32 %v413, %v431
    %v435 = vld [vmem:[#allocation2 + $0xd0] sm:$0xff]
    %v436 = vld [vmem:[#allocation2 + $0xd8] sm:$0xff]
    %v437 = vld [vmem:[#allocation2 + $0xe0] sm:$0xff]
    %438 = vset.pattern.permute.xlu0 2
    %439 = vperm.xlu0 %438, %v390
    %v440 = vpop.permute.xlu0 %439
    %442 = vset.pattern.permute.xlu0 2
    %443 = vperm.xlu0 %442, %v391
    %v444 = vpop.permute.xlu0 %443
    %446 = vset.pattern.permute.xlu0 2
    %447 = vperm.xlu0 %446, %v392
    %v448 = vpop.permute.xlu0 %447
    %v450 = vmul.f32 %v440, %v435
    %v451 = vmul.f32 %v444, %v436
    %v452 = vmul.f32 %v448, %v437
    %v453 = vadd.f32 %v432, %v450
    %v454 = vadd.f32 %v433, %v451
    %v455 = vadd.f32 %v434, %v452
    %v456 = vld [vmem:[#allocation2 + $0xe8] sm:$0xff]
    %v457 = vld [vmem:[#allocation2 + $0xf0] sm:$0xff]
    %v458 = vld [vmem:[#allocation2 + $0xf8] sm:$0xff]
    %459 = vset.pattern.permute.xlu0 3
    %460 = vperm.xlu0 %459, %v390
    %v461 = vpop.permute.xlu0 %460
    %463 = vset.pattern.permute.xlu0 3
    %464 = vperm.xlu0 %463, %v391
    %v465 = vpop.permute.xlu0 %464
    %467 = vset.pattern.permute.xlu0 3
    %468 = vperm.xlu0 %467, %v392
    %v469 = vpop.permute.xlu0 %468
    %v471 = vmul.f32 %v461, %v456
    %v472 = vmul.f32 %v465, %v457
    %v473 = vmul.f32 %v469, %v458
    %v474 = vadd.f32 %v453, %v471
    %v475 = vadd.f32 %v454, %v472
    %v476 = vadd.f32 %v455, %v473
    %v477 = vld [vmem:[#allocation2 + $0x100] sm:$0xff]
    %v478 = vld [vmem:[#allocation2 + $0x108] sm:$0xff]
    %v479 = vld [vmem:[#allocation2 + $0x110] sm:$0xff]
    %480 = vset.pattern.permute.xlu0 4
    %481 = vperm.xlu0 %480, %v390
    %v482 = vpop.permute.xlu0 %481
    %484 = vset.pattern.permute.xlu0 4
    %485 = vperm.xlu0 %484, %v391
    %v486 = vpop.permute.xlu0 %485
    %488 = vset.pattern.permute.xlu0 4
    %489 = vperm.xlu0 %488, %v392
    %v490 = vpop.permute.xlu0 %489
    %v492 = vmul.f32 %v482, %v477
    %v493 = vmul.f32 %v486, %v478
    %v494 = vmul.f32 %v490, %v479
    %v495 = vadd.f32 %v474, %v492
    %v496 = vadd.f32 %v475, %v493
    %v497 = vadd.f32 %v476, %v494
    %v498 = vld [vmem:[#allocation2 + $0x118] sm:$0xff]
    %v499 = vld [vmem:[#allocation2 + $0x120] sm:$0xff]
    %v500 = vld [vmem:[#allocation2 + $0x128] sm:$0xff]
    %501 = vset.pattern.permute.xlu0 5
    %502 = vperm.xlu0 %501, %v390
    %v503 = vpop.permute.xlu0 %502
    %505 = vset.pattern.permute.xlu0 5
    %506 = vperm.xlu0 %505, %v391
    %v507 = vpop.permute.xlu0 %506
    %509 = vset.pattern.permute.xlu0 5
    %510 = vperm.xlu0 %509, %v392
    %v511 = vpop.permute.xlu0 %510
    %v513 = vmul.f32 %v503, %v498
    %v514 = vmul.f32 %v507, %v499
    %v515 = vmul.f32 %v511, %v500
    %v516 = vadd.f32 %v495, %v513
    %v517 = vadd.f32 %v496, %v514
    %v518 = vadd.f32 %v497, %v515
    %v519 = vld [vmem:[#allocation2 + $0x130] sm:$0xff]
    %v520 = vld [vmem:[#allocation2 + $0x138] sm:$0xff]
    %v521 = vld [vmem:[#allocation2 + $0x140] sm:$0xff]
    %522 = vset.pattern.permute.xlu0 6
    %523 = vperm.xlu0 %522, %v390
    %v524 = vpop.permute.xlu0 %523
    %526 = vset.pattern.permute.xlu0 6
    %527 = vperm.xlu0 %526, %v391
    %v528 = vpop.permute.xlu0 %527
    %530 = vset.pattern.permute.xlu0 6
    %531 = vperm.xlu0 %530, %v392
    %v532 = vpop.permute.xlu0 %531
    %v534 = vmul.f32 %v524, %v519
    %v535 = vmul.f32 %v528, %v520
    %v536 = vmul.f32 %v532, %v521
    %v537 = vadd.f32 %v516, %v534
    %v538 = vadd.f32 %v517, %v535
    %v539 = vadd.f32 %v518, %v536
    %v540 = vld [vmem:[#allocation2 + $0x148] sm:$0xff]
    %v541 = vld [vmem:[#allocation2 + $0x150] sm:$0xff]
    %v542 = vld [vmem:[#allocation2 + $0x158] sm:$0xff]
    %543 = vset.pattern.permute.xlu0 7
    %544 = vperm.xlu0 %543, %v390
    %v545 = vpop.permute.xlu0 %544
    %547 = vset.pattern.permute.xlu0 7
    %548 = vperm.xlu0 %547, %v391
    %v549 = vpop.permute.xlu0 %548
    %551 = vset.pattern.permute.xlu0 7
    %552 = vperm.xlu0 %551, %v392
    %v553 = vpop.permute.xlu0 %552
    %v555 = vmul.f32 %v545, %v540
    %v556 = vmul.f32 %v549, %v541
    %v557 = vmul.f32 %v553, %v542
    %v558 = vadd.f32 %v537, %v555
    %v559 = vadd.f32 %v538, %v556
    %v560 = vadd.f32 %v539, %v557
    %v561 = vld [vmem:[#allocation2 + $0x160] sm:$0xff]
    %v562 = vld [vmem:[#allocation2 + $0x168] sm:$0xff]
    %v563 = vld [vmem:[#allocation2 + $0x170] sm:$0xff]
    %564 = vset.pattern.permute.xlu0 8
    %565 = vperm.xlu0 %564, %v390
    %v566 = vpop.permute.xlu0 %565
    %568 = vset.pattern.permute.xlu0 8
    %569 = vperm.xlu0 %568, %v391
    %v570 = vpop.permute.xlu0 %569
    %572 = vset.pattern.permute.xlu0 8
    %573 = vperm.xlu0 %572, %v392
    %v574 = vpop.permute.xlu0 %573
    %v576 = vmul.f32 %v566, %v561
    %v577 = vmul.f32 %v570, %v562
    %v578 = vmul.f32 %v574, %v563
    %v579 = vadd.f32 %v558, %v576
    %v580 = vadd.f32 %v559, %v577
    %v581 = vadd.f32 %v560, %v578
    %v582 = vld [vmem:[#allocation2 + $0x178] sm:$0xff]
    %v583 = vld [vmem:[#allocation2 + $0x180] sm:$0xff]
    %v584 = vld [vmem:[#allocation2 + $0x188] sm:$0xff]
    %585 = vset.pattern.permute.xlu0 9
    %586 = vperm.xlu0 %585, %v390
    %v587 = vpop.permute.xlu0 %586
    %589 = vset.pattern.permute.xlu0 9
    %590 = vperm.xlu0 %589, %v391
    %v591 = vpop.permute.xlu0 %590
    %593 = vset.pattern.permute.xlu0 9
    %594 = vperm.xlu0 %593, %v392
    %v595 = vpop.permute.xlu0 %594
    %v597 = vmul.f32 %v587, %v582
    %v598 = vmul.f32 %v591, %v583
    %v599 = vmul.f32 %v595, %v584
    %v600 = vadd.f32 %v579, %v597
    %v601 = vadd.f32 %v580, %v598
    %v602 = vadd.f32 %v581, %v599
    %v603 = vld [vmem:[#allocation2 + $0x190] sm:$0xff]
    %v604 = vld [vmem:[#allocation2 + $0x198] sm:$0xff]
    %v605 = vld [vmem:[#allocation2 + $0x1a0] sm:$0xff]
    %606 = vset.pattern.permute.xlu0 10
    %607 = vperm.xlu0 %606, %v390
    %v608 = vpop.permute.xlu0 %607
    %610 = vset.pattern.permute.xlu0 10
    %611 = vperm.xlu0 %610, %v391
    %v612 = vpop.permute.xlu0 %611
    %614 = vset.pattern.permute.xlu0 10
    %615 = vperm.xlu0 %614, %v392
    %v616 = vpop.permute.xlu0 %615
    %v618 = vmul.f32 %v608, %v603
    %v619 = vmul.f32 %v612, %v604
    %v620 = vmul.f32 %v616, %v605
    %v621 = vadd.f32 %v600, %v618
    %v622 = vadd.f32 %v601, %v619
    %v623 = vadd.f32 %v602, %v620
    %v624 = vld [vmem:[#allocation2 + $0x1a8] sm:$0xff]
    %v625 = vld [vmem:[#allocation2 + $0x1b0] sm:$0xff]
    %v626 = vld [vmem:[#allocation2 + $0x1b8] sm:$0xff]
    %627 = vset.pattern.permute.xlu0 11
    %628 = vperm.xlu0 %627, %v390
    %v629 = vpop.permute.xlu0 %628
    %631 = vset.pattern.permute.xlu0 11
    %632 = vperm.xlu0 %631, %v391
    %v633 = vpop.permute.xlu0 %632
    %635 = vset.pattern.permute.xlu0 11
    %636 = vperm.xlu0 %635, %v392
    %v637 = vpop.permute.xlu0 %636
    %v639 = vmul.f32 %v629, %v624
    %v640 = vmul.f32 %v633, %v625
    %v641 = vmul.f32 %v637, %v626
    %v642 = vadd.f32 %v621, %v639
    %v643 = vadd.f32 %v622, %v640
    %v644 = vadd.f32 %v623, %v641
    %v645 = vld [vmem:[#allocation2 + $0x1c0] sm:$0xff]
    %v646 = vld [vmem:[#allocation2 + $0x1c8] sm:$0xff]
    %v647 = vld [vmem:[#allocation2 + $0x1d0] sm:$0xff]
    %648 = vset.pattern.permute.xlu0 12
    %649 = vperm.xlu0 %648, %v390
    %v650 = vpop.permute.xlu0 %649
    %652 = vset.pattern.permute.xlu0 12
    %653 = vperm.xlu0 %652, %v391
    %v654 = vpop.permute.xlu0 %653
    %656 = vset.pattern.permute.xlu0 12
    %657 = vperm.xlu0 %656, %v392
    %v658 = vpop.permute.xlu0 %657
    %v660 = vmul.f32 %v650, %v645
    %v661 = vmul.f32 %v654, %v646
    %v662 = vmul.f32 %v658, %v647
    %v663 = vadd.f32 %v642, %v660
    %v664 = vadd.f32 %v643, %v661
    %v665 = vadd.f32 %v644, %v662
    %v666 = vld [vmem:[#allocation2 + $0x1d8] sm:$0xff]
    %v667 = vld [vmem:[#allocation2 + $0x1e0] sm:$0xff]
    %v668 = vld [vmem:[#allocation2 + $0x1e8] sm:$0xff]
    %669 = vset.pattern.permute.xlu0 13
    %670 = vperm.xlu0 %669, %v390
    %v671 = vpop.permute.xlu0 %670
    %673 = vset.pattern.permute.xlu0 13
    %674 = vperm.xlu0 %673, %v391
    %v675 = vpop.permute.xlu0 %674
    %677 = vset.pattern.permute.xlu0 13
    %678 = vperm.xlu0 %677, %v392
    %v679 = vpop.permute.xlu0 %678
    %v681 = vmul.f32 %v671, %v666
    %v682 = vmul.f32 %v675, %v667
    %v683 = vmul.f32 %v679, %v668
    %v684 = vadd.f32 %v663, %v681
    %v685 = vadd.f32 %v664, %v682
    %v686 = vadd.f32 %v665, %v683
    %v687 = vld [vmem:[#allocation2 + $0x1f0] sm:$0xff]
    %v688 = vld [vmem:[#allocation2 + $0x1f8] sm:$0xff]
    %v689 = vld [vmem:[#allocation2 + $0x200] sm:$0xff]
    %690 = vset.pattern.permute.xlu0 14
    %691 = vperm.xlu0 %690, %v390
    %v692 = vpop.permute.xlu0 %691
    %694 = vset.pattern.permute.xlu0 14
    %695 = vperm.xlu0 %694, %v391
    %v696 = vpop.permute.xlu0 %695
    %698 = vset.pattern.permute.xlu0 14
    %699 = vperm.xlu0 %698, %v392
    %v700 = vpop.permute.xlu0 %699
    %v702 = vmul.f32 %v692, %v687
    %v703 = vmul.f32 %v696, %v688
    %v704 = vmul.f32 %v700, %v689
    %v705 = vadd.f32 %v684, %v702
    %v706 = vadd.f32 %v685, %v703
    %v707 = vadd.f32 %v686, %v704
    %v708 = vld [vmem:[#allocation2 + $0x208] sm:$0xff]
    %v709 = vld [vmem:[#allocation2 + $0x210] sm:$0xff]
    %v710 = vld [vmem:[#allocation2 + $0x218] sm:$0xff]
    %711 = vset.pattern.permute.xlu0 15
    %712 = vperm.xlu0 %711, %v390
    %v713 = vpop.permute.xlu0 %712
    %715 = vset.pattern.permute.xlu0 15
    %716 = vperm.xlu0 %715, %v391
    %v717 = vpop.permute.xlu0 %716
    %719 = vset.pattern.permute.xlu0 15
    %720 = vperm.xlu0 %719, %v392
    %v721 = vpop.permute.xlu0 %720
    %v723 = vmul.f32 %v713, %v708
    %v724 = vmul.f32 %v717, %v709
    %v725 = vmul.f32 %v721, %v710
    %v726 = vadd.f32 %v705, %v723
    %v727 = vadd.f32 %v706, %v724
    %v728 = vadd.f32 %v707, %v725
    %v729 = vld [vmem:[#allocation2 + $0x3] sm:$0x1]
    %v730 = vadd.f32 %v726, %v727
    %v731 = vadd.f32 %v730, %v728
    %v732 = vrot.slane %v731, 4
    %v733 = vadd.f32 %v731, %v732
    %v734 = vrot.slane %v733, 2
    %v735 = vadd.f32 %v733, %v734
    %v736 = vrot.slane %v735, 1
    %v737 = vadd.f32 %v735, %v736
    %v738 = vadd.f32 %v729, %v737
    %vm739 = vcmp.ge.f32.partialorder %v738, 0.0
    %v740 = vmul.f32 %v738, 0.01
    %v741 = vsel %vm739, %v738, %v740
    %v742 = vld [vmem:[#allocation2 + $0x20] sm:$0xff]
    %v743 = vld [vmem:[#allocation2 + $0x28] sm:$0xff]
    %v744 = vld [vmem:[#allocation2 + $0x30] sm:$0xff]
    %v745 = vld [vmem:[#allocation2 + $0x38] sm:$0xff]
    %v746 = vld [vmem:[#allocation2 + $0x40] sm:$0xff]
    %v747 = vld [vmem:[#allocation2 + $0x48] sm:$0xff]
    %v748 = vld [vmem:[#allocation2 + $0x50] sm:$0xff]
    %v749 = vld [vmem:[#allocation2 + $0x58] sm:$0xff]
    %v750 = vld [vmem:[#allocation2 + $0x60] sm:$0xff]
    %v751 = vld [vmem:[#allocation2 + $0x68] sm:$0xff]
    %v752 = vld [vmem:[#allocation2 + $0x70] sm:$0xff]
    %v753 = vld [vmem:[#allocation2 + $0x78] sm:$0xff]
    %v754 = vld [vmem:[#allocation2 + $0x80] sm:$0xff]
    %v755 = vld [vmem:[#allocation2 + $0x88] sm:$0xff]
    %v756 = vld [vmem:[#allocation2 + $0x90] sm:$0xff]
    %v757 = vld [vmem:[#allocation2 + $0x98] sm:$0xff]
    %v758 = vld [vmem:[#allocation2 + $0x4] sm:$0x1]
    %v759 = vand.u32 %v757, 4294901760
    %760 = vmatpush.msra.mxu0 %v759
    %v761 = vand.u32 %v756, 4294901760
    %762 = vmatpush.msra.mxu0 %v761
    %v763 = vand.u32 %v755, 4294901760
    %764 = vmatpush.msra.mxu0 %v763
    %v765 = vand.u32 %v754, 4294901760
    %766 = vmatpush.msra.mxu0 %v765
    %v767 = vand.u32 %v753, 4294901760
    %768 = vmatpush.msra.mxu0 %v767
    %v769 = vand.u32 %v752, 4294901760
    %770 = vmatpush.msra.mxu0 %v769
    %v771 = vand.u32 %v751, 4294901760
    %772 = vmatpush.msra.mxu0 %v771
    %v773 = vand.u32 %v750, 4294901760
    %774 = vmatpush.msra.mxu0 %v773
    %v775 = vand.u32 %v749, 4294901760
    %776 = vmatpush.msra.mxu0 %v775
    %v777 = vand.u32 %v748, 4294901760
    %778 = vmatpush.msra.mxu0 %v777
    %v779 = vand.u32 %v747, 4294901760
    %780 = vmatpush.msra.mxu0 %v779
    %v781 = vand.u32 %v746, 4294901760
    %782 = vmatpush.msra.mxu0 %v781
    %v783 = vand.u32 %v745, 4294901760
    %784 = vmatpush.msra.mxu0 %v783
    %v785 = vand.u32 %v744, 4294901760
    %786 = vmatpush.msra.mxu0 %v785
    %v787 = vand.u32 %v743, 4294901760
    %788 = vmatpush.msra.mxu0 %v787
    %v789 = vand.u32 %v742, 4294901760
    %790 = vmatpush.msra.mxu0 %v789
    %v791 = vand.u32 %v741, 4294901760
    %v792 = vsub.f32 %v741, %v791
    %v793 = vand.u32 %v792, 4294901760
    %v794 = vsub.f32 %v792, %v793
    %v795 = vand.u32 %v794, 4294901760
    %796 = vmatmul.f32.gmra.mxu0 %v795
    %v797 = vpop.f32.mrf.mxu0
    %v798 = vadd.f32 %v758, %v797
    %799 = vdwg.mxu0
    %v800 = vand.u32 %v757, 4294901760
    %v801 = vsub.f32 %v757, %v800
    %v802 = vand.u32 %v801, 4294901760
    %v803 = vsub.f32 %v801, %v802
    %v804 = vand.u32 %v803, 4294901760
    %805 = vmatpush.msra.mxu0 %v804
    %v806 = vand.u32 %v756, 4294901760
    %v807 = vsub.f32 %v756, %v806
    %v808 = vand.u32 %v807, 4294901760
    %v809 = vsub.f32 %v807, %v808
    %v810 = vand.u32 %v809, 4294901760
    %811 = vmatpush.msra.mxu0 %v810
    %v812 = vand.u32 %v755, 4294901760
    %v813 = vsub.f32 %v755, %v812
    %v814 = vand.u32 %v813, 4294901760
    %v815 = vsub.f32 %v813, %v814
    %v816 = vand.u32 %v815, 4294901760
    %817 = vmatpush.msra.mxu0 %v816
    %v818 = vand.u32 %v754, 4294901760
    %v819 = vsub.f32 %v754, %v818
    %v820 = vand.u32 %v819, 4294901760
    %v821 = vsub.f32 %v819, %v820
    %v822 = vand.u32 %v821, 4294901760
    %823 = vmatpush.msra.mxu0 %v822
    %v824 = vand.u32 %v753, 4294901760
    %v825 = vsub.f32 %v753, %v824
    %v826 = vand.u32 %v825, 4294901760
    %v827 = vsub.f32 %v825, %v826
    %v828 = vand.u32 %v827, 4294901760
    %829 = vmatpush.msra.mxu0 %v828
    %v830 = vand.u32 %v752, 4294901760
    %v831 = vsub.f32 %v752, %v830
    %v832 = vand.u32 %v831, 4294901760
    %v833 = vsub.f32 %v831, %v832
    %v834 = vand.u32 %v833, 4294901760
    %835 = vmatpush.msra.mxu0 %v834
    %v836 = vand.u32 %v751, 4294901760
    %v837 = vsub.f32 %v751, %v836
    %v838 = vand.u32 %v837, 4294901760
    %v839 = vsub.f32 %v837, %v838
    %v840 = vand.u32 %v839, 4294901760
    %841 = vmatpush.msra.mxu0 %v840
    %v842 = vand.u32 %v750, 4294901760
    %v843 = vsub.f32 %v750, %v842
    %v844 = vand.u32 %v843, 4294901760
    %v845 = vsub.f32 %v843, %v844
    %v846 = vand.u32 %v845, 4294901760
    %847 = vmatpush.msra.mxu0 %v846
    %v848 = vand.u32 %v749, 4294901760
    %v849 = vsub.f32 %v749, %v848
    %v850 = vand.u32 %v849, 4294901760
    %v851 = vsub.f32 %v849, %v850
    %v852 = vand.u32 %v851, 4294901760
    %853 = vmatpush.msra.mxu0 %v852
    %v854 = vand.u32 %v748, 4294901760
    %v855 = vsub.f32 %v748, %v854
    %v856 = vand.u32 %v855, 4294901760
    %v857 = vsub.f32 %v855, %v856
    %v858 = vand.u32 %v857, 4294901760
    %859 = vmatpush.msra.mxu0 %v858
    %v860 = vand.u32 %v747, 4294901760
    %v861 = vsub.f32 %v747, %v860
    %v862 = vand.u32 %v861, 4294901760
    %v863 = vsub.f32 %v861, %v862
    %v864 = vand.u32 %v863, 4294901760
    %865 = vmatpush.msra.mxu0 %v864
    %v866 = vand.u32 %v746, 4294901760
    %v867 = vsub.f32 %v746, %v866
    %v868 = vand.u32 %v867, 4294901760
    %v869 = vsub.f32 %v867, %v868
    %v870 = vand.u32 %v869, 4294901760
    %871 = vmatpush.msra.mxu0 %v870
    %v872 = vand.u32 %v745, 4294901760
    %v873 = vsub.f32 %v745, %v872
    %v874 = vand.u32 %v873, 4294901760
    %v875 = vsub.f32 %v873, %v874
    %v876 = vand.u32 %v875, 4294901760
    %877 = vmatpush.msra.mxu0 %v876
    %v878 = vand.u32 %v744, 4294901760
    %v879 = vsub.f32 %v744, %v878
    %v880 = vand.u32 %v879, 4294901760
    %v881 = vsub.f32 %v879, %v880
    %v882 = vand.u32 %v881, 4294901760
    %883 = vmatpush.msra.mxu0 %v882
    %v884 = vand.u32 %v743, 4294901760
    %v885 = vsub.f32 %v743, %v884
    %v886 = vand.u32 %v885, 4294901760
    %v887 = vsub.f32 %v885, %v886
    %v888 = vand.u32 %v887, 4294901760
    %889 = vmatpush.msra.mxu0 %v888
    %v890 = vand.u32 %v742, 4294901760
    %v891 = vsub.f32 %v742, %v890
    %v892 = vand.u32 %v891, 4294901760
    %v893 = vsub.f32 %v891, %v892
    %v894 = vand.u32 %v893, 4294901760
    %895 = vmatpush.msra.mxu0 %v894
    %v896 = vand.u32 %v741, 4294901760
    %897 = vmatmul.f32.gmra.mxu0 %v896
    %v898 = vpop.f32.mrf.mxu0
    %v899 = vadd.f32 %v798, %v898
    %900 = vdwg.mxu0
    %v901 = vand.u32 %v757, 4294901760
    %v902 = vsub.f32 %v757, %v901
    %903 = vmatpush.msra.mxu0 %v902
    %v904 = vand.u32 %v756, 4294901760
    %v905 = vsub.f32 %v756, %v904
    %906 = vmatpush.msra.mxu0 %v905
    %v907 = vand.u32 %v755, 4294901760
    %v908 = vsub.f32 %v755, %v907
    %909 = vmatpush.msra.mxu0 %v908
    %v910 = vand.u32 %v754, 4294901760
    %v911 = vsub.f32 %v754, %v910
    %912 = vmatpush.msra.mxu0 %v911
    %v913 = vand.u32 %v753, 4294901760
    %v914 = vsub.f32 %v753, %v913
    %915 = vmatpush.msra.mxu0 %v914
    %v916 = vand.u32 %v752, 4294901760
    %v917 = vsub.f32 %v752, %v916
    %918 = vmatpush.msra.mxu0 %v917
    %v919 = vand.u32 %v751, 4294901760
    %v920 = vsub.f32 %v751, %v919
    %921 = vmatpush.msra.mxu0 %v920
    %v922 = vand.u32 %v750, 4294901760
    %v923 = vsub.f32 %v750, %v922
    %924 = vmatpush.msra.mxu0 %v923
    %v925 = vand.u32 %v749, 4294901760
    %v926 = vsub.f32 %v749, %v925
    %927 = vmatpush.msra.mxu0 %v926
    %v928 = vand.u32 %v748, 4294901760
    %v929 = vsub.f32 %v748, %v928
    %930 = vmatpush.msra.mxu0 %v929
    %v931 = vand.u32 %v747, 4294901760
    %v932 = vsub.f32 %v747, %v931
    %933 = vmatpush.msra.mxu0 %v932
    %v934 = vand.u32 %v746, 4294901760
    %v935 = vsub.f32 %v746, %v934
    %936 = vmatpush.msra.mxu0 %v935
    %v937 = vand.u32 %v745, 4294901760
    %v938 = vsub.f32 %v745, %v937
    %939 = vmatpush.msra.mxu0 %v938
    %v940 = vand.u32 %v744, 4294901760
    %v941 = vsub.f32 %v744, %v940
    %942 = vmatpush.msra.mxu0 %v941
    %v943 = vand.u32 %v743, 4294901760
    %v944 = vsub.f32 %v743, %v943
    %945 = vmatpush.msra.mxu0 %v944
    %v946 = vand.u32 %v742, 4294901760
    %v947 = vsub.f32 %v742, %v946
    %948 = vmatpush.msra.mxu0 %v947
    %v949 = vand.u32 %v741, 4294901760
    %v950 = vsub.f32 %v741, %v949
    %951 = vmatmul.f32.gmra.mxu0 %v950
    %v952 = vpop.f32.mrf.mxu0
    %v953 = vadd.f32 %v899, %v952
    %954 = vdwg.mxu0
    %v955 = vand.u32 %v757, 4294901760
    %956 = vmatpush.msra.mxu0 %v955
    %v957 = vand.u32 %v756, 4294901760
    %958 = vmatpush.msra.mxu0 %v957
    %v959 = vand.u32 %v755, 4294901760
    %960 = vmatpush.msra.mxu0 %v959
    %v961 = vand.u32 %v754, 4294901760
    %962 = vmatpush.msra.mxu0 %v961
    %v963 = vand.u32 %v753, 4294901760
    %964 = vmatpush.msra.mxu0 %v963
    %v965 = vand.u32 %v752, 4294901760
    %966 = vmatpush.msra.mxu0 %v965
    %v967 = vand.u32 %v751, 4294901760
    %968 = vmatpush.msra.mxu0 %v967
    %v969 = vand.u32 %v750, 4294901760
    %970 = vmatpush.msra.mxu0 %v969
    %v971 = vand.u32 %v749, 4294901760
    %972 = vmatpush.msra.mxu0 %v971
    %v973 = vand.u32 %v748, 4294901760
    %974 = vmatpush.msra.mxu0 %v973
    %v975 = vand.u32 %v747, 4294901760
    %976 = vmatpush.msra.mxu0 %v975
    %v977 = vand.u32 %v746, 4294901760
    %978 = vmatpush.msra.mxu0 %v977
    %v979 = vand.u32 %v745, 4294901760
    %980 = vmatpush.msra.mxu0 %v979
    %v981 = vand.u32 %v744, 4294901760
    %982 = vmatpush.msra.mxu0 %v981
    %v983 = vand.u32 %v743, 4294901760
    %984 = vmatpush.msra.mxu0 %v983
    %v985 = vand.u32 %v742, 4294901760
    %986 = vmatpush.msra.mxu0 %v985
    %v987 = vand.u32 %v741, 4294901760
    %v988 = vsub.f32 %v741, %v987
    %v989 = vand.u32 %v988, 4294901760
    %990 = vmatmul.f32.gmra.mxu0 %v989
    %v991 = vpop.f32.mrf.mxu0
    %v992 = vadd.f32 %v953, %v991
    %993 = vdwg.mxu0
    %v994 = vand.u32 %v757, 4294901760
    %v995 = vsub.f32 %v757, %v994
    %v996 = vand.u32 %v995, 4294901760
    %997 = vmatpush.msra.mxu0 %v996
    %v998 = vand.u32 %v756, 4294901760
    %v999 = vsub.f32 %v756, %v998
    %v1000 = vand.u32 %v999, 4294901760
    %1001 = vmatpush.msra.mxu0 %v1000
    %v1002 = vand.u32 %v755, 4294901760
    %v1003 = vsub.f32 %v755, %v1002
    %v1004 = vand.u32 %v1003, 4294901760
    %1005 = vmatpush.msra.mxu0 %v1004
    %v1006 = vand.u32 %v754, 4294901760
    %v1007 = vsub.f32 %v754, %v1006
    %v1008 = vand.u32 %v1007, 4294901760
    %1009 = vmatpush.msra.mxu0 %v1008
    %v1010 = vand.u32 %v753, 4294901760
    %v1011 = vsub.f32 %v753, %v1010
    %v1012 = vand.u32 %v1011, 4294901760
    %1013 = vmatpush.msra.mxu0 %v1012
    %v1014 = vand.u32 %v752, 4294901760
    %v1015 = vsub.f32 %v752, %v1014
    %v1016 = vand.u32 %v1015, 4294901760
    %1017 = vmatpush.msra.mxu0 %v1016
    %v1018 = vand.u32 %v751, 4294901760
    %v1019 = vsub.f32 %v751, %v1018
    %v1020 = vand.u32 %v1019, 4294901760
    %1021 = vmatpush.msra.mxu0 %v1020
    %v1022 = vand.u32 %v750, 4294901760
    %v1023 = vsub.f32 %v750, %v1022
    %v1024 = vand.u32 %v1023, 4294901760
    %1025 = vmatpush.msra.mxu0 %v1024
    %v1026 = vand.u32 %v749, 4294901760
    %v1027 = vsub.f32 %v749, %v1026
    %v1028 = vand.u32 %v1027, 4294901760
    %1029 = vmatpush.msra.mxu0 %v1028
    %v1030 = vand.u32 %v748, 4294901760
    %v1031 = vsub.f32 %v748, %v1030
    %v1032 = vand.u32 %v1031, 4294901760
    %1033 = vmatpush.msra.mxu0 %v1032
    %v1034 = vand.u32 %v747, 4294901760
    %v1035 = vsub.f32 %v747, %v1034
    %v1036 = vand.u32 %v1035, 4294901760
    %1037 = vmatpush.msra.mxu0 %v1036
    %v1038 = vand.u32 %v746, 4294901760
    %v1039 = vsub.f32 %v746, %v1038
    %v1040 = vand.u32 %v1039, 4294901760
    %1041 = vmatpush.msra.mxu0 %v1040
    %v1042 = vand.u32 %v745, 4294901760
    %v1043 = vsub.f32 %v745, %v1042
    %v1044 = vand.u32 %v1043, 4294901760
    %1045 = vmatpush.msra.mxu0 %v1044
    %v1046 = vand.u32 %v744, 4294901760
    %v1047 = vsub.f32 %v744, %v1046
    %v1048 = vand.u32 %v1047, 4294901760
    %1049 = vmatpush.msra.mxu0 %v1048
    %v1050 = vand.u32 %v743, 4294901760
    %v1051 = vsub.f32 %v743, %v1050
    %v1052 = vand.u32 %v1051, 4294901760
    %1053 = vmatpush.msra.mxu0 %v1052
    %v1054 = vand.u32 %v742, 4294901760
    %v1055 = vsub.f32 %v742, %v1054
    %v1056 = vand.u32 %v1055, 4294901760
    %1057 = vmatpush.msra.mxu0 %v1056
    %v1058 = vand.u32 %v741, 4294901760
    %1059 = vmatmul.f32.gmra.mxu0 %v1058
    %v1060 = vpop.f32.mrf.mxu0
    %v1061 = vadd.f32 %v992, %v1060
    %1062 = vdwg.mxu0
    %v1063 = vand.u32 %v757, 4294901760
    %1064 = vmatpush.msra.mxu0 %v1063
    %v1065 = vand.u32 %v756, 4294901760
    %1066 = vmatpush.msra.mxu0 %v1065
    %v1067 = vand.u32 %v755, 4294901760
    %1068 = vmatpush.msra.mxu0 %v1067
    %v1069 = vand.u32 %v754, 4294901760
    %1070 = vmatpush.msra.mxu0 %v1069
    %v1071 = vand.u32 %v753, 4294901760
    %1072 = vmatpush.msra.mxu0 %v1071
    %v1073 = vand.u32 %v752, 4294901760
    %1074 = vmatpush.msra.mxu0 %v1073
    %v1075 = vand.u32 %v751, 4294901760
    %1076 = vmatpush.msra.mxu0 %v1075
    %v1077 = vand.u32 %v750, 4294901760
    %1078 = vmatpush.msra.mxu0 %v1077
    %v1079 = vand.u32 %v749, 4294901760
    %1080 = vmatpush.msra.mxu0 %v1079
    %v1081 = vand.u32 %v748, 4294901760
    %1082 = vmatpush.msra.mxu0 %v1081
    %v1083 = vand.u32 %v747, 4294901760
    %1084 = vmatpush.msra.mxu0 %v1083
    %v1085 = vand.u32 %v746, 4294901760
    %1086 = vmatpush.msra.mxu0 %v1085
    %v1087 = vand.u32 %v745, 4294901760
    %1088 = vmatpush.msra.mxu0 %v1087
    %v1089 = vand.u32 %v744, 4294901760
    %1090 = vmatpush.msra.mxu0 %v1089
    %v1091 = vand.u32 %v743, 4294901760
    %1092 = vmatpush.msra.mxu0 %v1091
    %v1093 = vand.u32 %v742, 4294901760
    %1094 = vmatpush.msra.mxu0 %v1093
    %v1095 = vand.u32 %v741, 4294901760
    %1096 = vmatmul.f32.gmra.mxu0 %v1095
    %v1097 = vpop.f32.mrf.mxu0
    %v1098 = vadd.f32 %v1061, %v1097
    %1099 = vdwg.mxu0
    %vm1100 = vcmask 1040384
    %v1101 = vsel %vm1100, %v1098, -inf
    %1102 = vmax.xlane.f32.xlu0 %v1101
    %v1103 = vpop.xlane.xlu0 %1102
    %v1104 = vsub.f32 %v1098, %v1103
    %v1105 = vmul.f32 %v1104, 1.442695
    %v1106 = vpow.pop %v1105
    %v1107 = vsel %vm1100, %v1106, 0.0
    %1108 = vadd.xlane.f32.xlu0 %v1107
    %v1109 = vpop.xlane.xlu0 %1108
    %v1110 = vlog2.pop %v1109
    %v1111 = vmul.f32 %v1110, 0.6931472
    %v1112 = vsub.f32 %v1104, %v1111
    %1113 = vst [vmem:[#allocation5] sm:$0x1] %v1112
    // Predicated region
    $region14: #{cnn_forward.1} parent=1 // pred_check
      _
    $region15: #{cnn_forward.1} parent=1 // pred_check_branch
      %1115 = sbr.rel (0) target = $region17
    $region16: #{cnn_forward.1} parent=1 // pred_region
      %1117 = vsyncadd [#allocation4], 0
      %s1119 = sshll.u32 [#allocation5], 4
      %s1120 = int_to_ptr.vmem [resolvable:$true] %s1119
      %s1121 = sshll.u32 %s2, 4
      %s1122 = int_to_ptr.hbm [resolvable:$true] %s1121
      %1124 = dma.vmem_to_hbm [thread:$0]  %s1120, 16, %s1122, [#allocation4]
    $region17: #{cnn_forward.1} parent=1 // pred_fallthru
      _
    // Predicated region
    $region18: #{cnn_forward.1} parent=1 // pred_check
      _
    $region19: #{cnn_forward.1} parent=1 // pred_check_branch
      %1126 = sbr.rel (0) target = $region21
    $region20: #{cnn_forward.1} parent=1 // pred_region
      %1128 = dma.done [#allocation4], 16
    $region21: #{cnn_forward.1} parent=1 // pred_fallthru
      _
    %1129 = vsyncpa [#allocation3], 1
    %1130 = vsyncpa [#allocation4], 1

</llo_original>
